<compile_context>
chip_gen: v7x
topology: tpu7x:2x2x1
jax: 0.10.0
libtpu: 0.0.40
codegen_flags: <defaults>
</compile_context>

<pallas_src>
import jax
import jax.numpy as jnp
from jax.experimental import pallas as pl
from jax.experimental.pallas import tpu as pltpu


def _round_up(x, m):
    return (x + m - 1) // m * m


def _cdiv(a, b):
    return (a + b - 1) // b


def mlp_a_kernel(x_ref, a_ref, w1x_ref, w1a_ref, b1_ref, w2_ref, b2_ref,
                 out_ref, *, slope=0.01):
    """One batch tile: Linear -> LeakyReLU -> Linear -> LeakyReLU -> log_softmax."""
    # Layer 1 as a split-K (x | a) matmul: avoids any HBM-materialized concat.
    # Inputs are cast to bf16 in VMEM (MXU operands); accumulation stays f32.
    h = (jnp.dot(x_ref[...].astype(jnp.bfloat16), w1x_ref[...],
                 preferred_element_type=jnp.float32)
         + jnp.dot(a_ref[...].astype(jnp.bfloat16), w1a_ref[...],
                   preferred_element_type=jnp.float32)
         + b1_ref[...])
    h = jnp.where(h > 0, h, slope * h)                     # LeakyReLU (f32, VPU)

    # Layer 2.  W2's output dim is left unpadded, so z has exactly out_feats
    # lanes -> no -inf masking of padded lanes is needed before log_softmax.
    z = (jnp.dot(h.astype(jnp.bfloat16), w2_ref[...],
                 preferred_element_type=jnp.float32)
         + b2_ref[...])
    z = jnp.where(z > 0, z, slope * z)                     # LeakyReLU

    # Numerically stable log_softmax over the class lanes.
    m = jnp.max(z, axis=1, keepdims=True)
    s = z - m
    lse = jnp.log(jnp.sum(jnp.exp(s), axis=1, keepdims=True))
    out_ref[...] = (s - lse).astype(out_ref.dtype)


def _vmem_budget_bytes():
    # ~75% of physical VMEM: ~96 MiB on v5e/v6e (128 MiB), ~48 MiB on v7x (64 MiB/TC).
    try:
        cap = int(pltpu.get_tpu_info().vmem_capacity_bytes)
    except Exception:
        cap = 64 << 20  # conservative fallback: assume the smallest (v7x)
    return (cap * 3) // 4


def mlp_a_forward(x, a, params):
    """x: (B, ...) flattened to (B, in_feats); a: (B, ...) flattened to (B, adj_feats).
    Returns (B, out_feats) float32 log-probabilities."""
    w1, b1, w2, b2 = params                 # w1: (in+adj, hid), w2: (hid, out)
    B = x.shape[0]
    x_flat = x.reshape(B, -1)               # no dtype round trip: cast happens in-kernel
    a_flat = a.reshape(B, -1)
    in_feats = x_flat.shape[1]
    adj_feats = a_flat.shape[1]
    hid_feats = w1.shape[1]
    out_feats = w2.shape[1]
    assert w1.shape[0] == in_feats + adj_feats

    # Hidden dim padded to an MXU-friendly width (256 multiples for the v6e/v7x
    # 2x256x256 MXU when large enough, 128 otherwise).  Weights only: tiny, one-time.
    HIDP = _round_up(hid_feats, 256 if hid_feats > 128 else 128)

    # ---- Weight packing (host-side, small, one-time): bf16, [in, out] layout. ----
    w1x = jnp.zeros((in_feats, HIDP), jnp.bfloat16).at[:, :hid_feats].set(
        w1[:in_feats].astype(jnp.bfloat16))
    w1a = jnp.zeros((adj_feats, HIDP), jnp.bfloat16).at[:, :hid_feats].set(
        w1[in_feats:].astype(jnp.bfloat16))
    b1_p = jnp.zeros((1, HIDP), jnp.float32).at[:, :hid_feats].set(
        b1.reshape(1, -1).astype(jnp.float32))
    w2_p = jnp.zeros((HIDP, out_feats), jnp.bfloat16).at[:hid_feats, :].set(
        w2.astype(jnp.bfloat16))
    b2_p = b2.reshape(1, -1).astype(jnp.float32)

    # ---- Batch tile from an explicit VMEM byte budget. ----
    budget = _vmem_budget_bytes()
    weight_bytes = 2 * (w1x.size * 2 + w1a.size * 2 + w2_p.size * 2   # worst case:
                        + b1_p.size * 4 + b2_p.size * 4)              # double-buffered
    per_row = (2 * (in_feats * x_flat.dtype.itemsize      # streamed x (double-buffered)
                    + adj_feats * a_flat.dtype.itemsize   # streamed a
                    + out_feats * 4)                      # streamed out (f32)
               + 8 * HIDP + 8 * out_feats)                # live intermediates (h, z)
    tb_cap = max(8, int((budget - weight_bytes - (4 << 20)) // per_row))
    tb_cap = min(tb_cap, 2048)

    if B <= 8:
        TB = B                                   # single full-extent batch block
    else:
        # >= 2 grid steps so both v7x TensorCores get work; near-divisor TB keeps
        # the cdiv-grid overhang (rows masked on writeback) below 8 rows per step.
        num_steps = max(2, _cdiv(B, tb_cap))
        TB = _round_up(_cdiv(B, num_steps), 8)
    grid = (_cdiv(B, TB),)

    def resident(shape, single_buffer):
        # Constant index_map -> fetched once and VMEM-resident across grid steps.
        if single_buffer:
            return pl.BlockSpec(shape, lambda i: (0, 0), pipeline_mode=pl.Buffered(1))
        return pl.BlockSpec(shape, lambda i: (0, 0))

    def build(single_buffer_weights):
        return pl.pallas_call(
            mlp_a_kernel,
            out_shape=jax.ShapeDtypeStruct((B, out_feats), jnp.float32),
            grid=grid,
            in_specs=[
                pl.BlockSpec((TB, in_feats), lambda i: (i, 0)),       # x tile (streamed, unpadded)
                pl.BlockSpec((TB, adj_feats), lambda i: (i, 0)),      # a tile (streamed, unpadded)
                resident((in_feats, HIDP), single_buffer_weights),    # W1x (VMEM-resident)
                resident((adj_feats, HIDP), single_buffer_weights),   # W1a
                resident((1, HIDP), single_buffer_weights),           # b1
                resident((HIDP, out_feats), single_buffer_weights),   # W2
                resident((1, out_feats), single_buffer_weights),      # b2
            ],
            out_specs=pl.BlockSpec((TB, out_feats), lambda i: (i, 0)),
            compiler_params=pltpu.CompilerParams(
                dimension_semantics=("parallel",),     # megacore-shardable batch grid
                vmem_limit_bytes=int(budget)),
        )

    args = (x_flat, a_flat, w1x, w1a, b1_p, w2_p, b2_p)
    try:
        out = build(True)(*args)       # single-buffered resident weights (VMEM saver)
    except Exception:
        out = build(False)(*args)      # fallback: default-buffered weight blocks
    return out


def init_params(key, total_feats, hid_feats, out_feats):
    """Deterministic init mimicking torch.nn.Linear (uniform +/- 1/sqrt(fan_in)).
    Weights are stored as [in, out] (transposed vs torch's [out, in])."""
    k1, k2, k3, k4 = jax.random.split(key, 4)
    bound1 = 1.0 / jnp.sqrt(total_feats)
    bound2 = 1.0 / jnp.sqrt(hid_feats)
    w1 = jax.random.uniform(k1, (total_feats, hid_feats), jnp.float32, -bound1, bound1)
    b1 = jax.random.uniform(k2, (1, hid_feats), jnp.float32, -bound1, bound1)
    w2 = jax.random.uniform(k3, (hid_feats, out_feats), jnp.float32, -bound2, bound2)
    b2 = jax.random.uniform(k4, (1, out_feats), jnp.float32, -bound2, bound2)
    return (w1, b1, w2, b2)


if __name__ == "__main__":
    # Small shapes consistent with the forward:
    #   x: (B, C, H, W) = (2, 4, 4, 4)  -> in_feats  = 64
    #   a: (B, adj)     = (2, 8)        -> adj_feats = 8
    #   total_feats = 72, hid_feats = 32, out_feats = 8
    # NOTE: at this size the kernel is pure launch overhead; batch more rows
    # (or fuse into the surrounding model) for real throughput.
    B, C, H, W = 2, 4, 4, 4
    adj_feats, hid_feats, out_feats = 8, 32, 8
    in_feats = C * H * W
    total_feats = in_feats + adj_feats

    key = jax.random.PRNGKey(0)
    kx, ka, kp = jax.random.split(key, 3)
    x = jax.random.normal(kx, (B, C, H, W), jnp.float32)
    a = jax.random.normal(ka, (B, adj_feats), jnp.float32)
    params = init_params(kp, total_feats, hid_feats, out_feats)

    out = mlp_a_forward(x, a, params)
    out = jax.block_until_ready(out)

    # Reference (pure JAX, f32) for semantics check.
    w1, b1, w2, b2 = params
    comb = jnp.concatenate([x.reshape(B, -1), a.reshape(B, -1)], axis=1)
    h_ref = comb @ w1 + b1
    h_ref = jnp.where(h_ref > 0, h_ref, 0.01 * h_ref)
    z_ref = h_ref @ w2 + b2
    z_ref = jnp.where(z_ref > 0, z_ref, 0.01 * z_ref)
    ref = jax.nn.log_softmax(z_ref, axis=1)

    row_sums = jnp.exp(out).sum(axis=1)
    assert out.shape == (B, out_feats)
    assert bool(jnp.allclose(row_sums, 1.0, atol=1e-5))
    # bf16 MXU operands -> loose tolerance vs. the f32 reference.
    assert bool(jnp.allclose(out, ref, atol=3e-2, rtol=3e-2))

    print("KERNEL_OK")
</pallas_src>

<mosaic_0001>
module attributes {stable_mosaic.version = 11 : i64} {
  func.func @mlp_a_kernel(%arg0: i32, %arg1: memref<2x64xf32, #tpu.memory_space<vmem>>, %arg2: memref<2x8xf32, #tpu.memory_space<vmem>>, %arg3: memref<64x128xbf16, #tpu.memory_space<vmem>>, %arg4: memref<8x128xbf16, #tpu.memory_space<vmem>>, %arg5: memref<1x128xf32, #tpu.memory_space<vmem>>, %arg6: memref<128x8xbf16, #tpu.memory_space<vmem>>, %arg7: memref<1x8xf32, #tpu.memory_space<vmem>>, %arg8: memref<2x8xf32, #tpu.memory_space<vmem>>) attributes {dimension_semantics = [#tpu.dimension_semantics<parallel>], iteration_bounds = array<i64: 1>, scalar_prefetch = 0 : i64, scratch_operands = 0 : i64, tpu.core_type = #tpu.core_type<tc>, window_params = [{transform_indices = @transform_0, window_bounds = array<i64: 2, 64>}, {transform_indices = @transform_1, window_bounds = array<i64: 2, 8>}, {pipeline_mode = #tpu.pipeline_mode<synchronous>, transform_indices = @transform_2, window_bounds = array<i64: 64, 128>}, {pipeline_mode = #tpu.pipeline_mode<synchronous>, transform_indices = @transform_3, window_bounds = array<i64: 8, 128>}, {pipeline_mode = #tpu.pipeline_mode<synchronous>, transform_indices = @transform_4, window_bounds = array<i64: 1, 128>}, {pipeline_mode = #tpu.pipeline_mode<synchronous>, transform_indices = @transform_5, window_bounds = array<i64: 128, 8>}, {pipeline_mode = #tpu.pipeline_mode<synchronous>, transform_indices = @transform_6, window_bounds = array<i64: 1, 8>}, {transform_indices = @transform_7, window_bounds = array<i64: 2, 8>}]} {
    %c0 = arith.constant 0 : index
    %c0_0 = arith.constant 0 : index
    %0 = vector.load %arg1[%c0, %c0_0] : memref<2x64xf32, #tpu.memory_space<vmem>>, vector<2x64xf32>
    %1 = arith.truncf %0 : vector<2x64xf32> to vector<2x64xbf16>
    %c0_1 = arith.constant 0 : index
    %c0_2 = arith.constant 0 : index
    %2 = vector.load %arg3[%c0_1, %c0_2] : memref<64x128xbf16, #tpu.memory_space<vmem>>, vector<64x128xbf16>
    %cst = arith.constant dense<0.000000e+00> : vector<2x128xf32>
    %3 = tpu.matmul %1, %2, %cst {dimension_numbers = #tpu.dot_dimension_numbers<[1], [0], [0], [1], [0, 0, 1, 1], [], []>} : vector<2x64xbf16>, vector<64x128xbf16>, vector<2x128xf32> -> vector<2x128xf32>
    %c0_3 = arith.constant 0 : index
    %c0_4 = arith.constant 0 : index
    %4 = vector.load %arg2[%c0_3, %c0_4] : memref<2x8xf32, #tpu.memory_space<vmem>>, vector<2x8xf32>
    %5 = arith.truncf %4 : vector<2x8xf32> to vector<2x8xbf16>
    %c0_5 = arith.constant 0 : index
    %c0_6 = arith.constant 0 : index
    %6 = vector.load %arg4[%c0_5, %c0_6] : memref<8x128xbf16, #tpu.memory_space<vmem>>, vector<8x128xbf16>
    %cst_7 = arith.constant dense<0.000000e+00> : vector<2x128xf32>
    %7 = tpu.matmul %5, %6, %cst_7 {dimension_numbers = #tpu.dot_dimension_numbers<[1], [0], [0], [1], [0, 0, 1, 1], [], []>} : vector<2x8xbf16>, vector<8x128xbf16>, vector<2x128xf32> -> vector<2x128xf32>
    %8 = arith.addf %3, %7 : vector<2x128xf32>
    %c0_8 = arith.constant 0 : index
    %c0_9 = arith.constant 0 : index
    %9 = vector.load %arg5[%c0_8, %c0_9] : memref<1x128xf32, #tpu.memory_space<vmem>>, vector<1x128xf32>
    %10 = vector.broadcast %9 : vector<1x128xf32> to vector<2x128xf32>
    %11 = arith.addf %8, %10 : vector<2x128xf32>
    %cst_10 = arith.constant 0.000000e+00 : f32
    %12 = vector.broadcast %cst_10 : f32 to vector<2x128xf32>
    %13 = arith.cmpf ogt, %11, %12 : vector<2x128xf32>
    %cst_11 = arith.constant 0.00999999977 : f32
    %14 = vector.broadcast %cst_11 : f32 to vector<2x128xf32>
    %15 = arith.mulf %14, %11 : vector<2x128xf32>
    %16 = arith.select %13, %11, %15 : vector<2x128xi1>, vector<2x128xf32>
    %17 = arith.truncf %16 : vector<2x128xf32> to vector<2x128xbf16>
    %c0_12 = arith.constant 0 : index
    %c0_13 = arith.constant 0 : index
    %18 = vector.load %arg6[%c0_12, %c0_13] : memref<128x8xbf16, #tpu.memory_space<vmem>>, vector<128x8xbf16>
    %cst_14 = arith.constant dense<0.000000e+00> : vector<2x8xf32>
    %19 = tpu.matmul %17, %18, %cst_14 {dimension_numbers = #tpu.dot_dimension_numbers<[1], [0], [0], [1], [0, 0, 1, 1], [], []>} : vector<2x128xbf16>, vector<128x8xbf16>, vector<2x8xf32> -> vector<2x8xf32>
    %c0_15 = arith.constant 0 : index
    %c0_16 = arith.constant 0 : index
    %20 = vector.load %arg7[%c0_15, %c0_16] : memref<1x8xf32, #tpu.memory_space<vmem>>, vector<1x8xf32>
    %21 = vector.broadcast %20 : vector<1x8xf32> to vector<2x8xf32>
    %22 = arith.addf %19, %21 : vector<2x8xf32>
    %cst_17 = arith.constant 0.000000e+00 : f32
    %23 = vector.broadcast %cst_17 : f32 to vector<2x8xf32>
    %24 = arith.cmpf ogt, %22, %23 : vector<2x8xf32>
    %cst_18 = arith.constant 0.00999999977 : f32
    %25 = vector.broadcast %cst_18 : f32 to vector<2x8xf32>
    %26 = arith.mulf %25, %22 : vector<2x8xf32>
    %27 = arith.select %24, %22, %26 : vector<2x8xi1>, vector<2x8xf32>
    %cst_19 = arith.constant dense<0xFF800000> : vector<2xf32>
    %28 = vector.multi_reduction <maximumf>, %27, %cst_19 [1] : vector<2x8xf32> to vector<2xf32>
    %29 = vector.shape_cast %28 : vector<2xf32> to vector<2x1xf32>
    %30 = vector.broadcast %29 : vector<2x1xf32> to vector<2x8xf32>
    %31 = arith.subf %27, %30 : vector<2x8xf32>
    %32 = math.exp %31 : vector<2x8xf32>
    %cst_20 = arith.constant dense<0.000000e+00> : vector<2xf32>
    %33 = vector.multi_reduction <add>, %32, %cst_20 [1] : vector<2x8xf32> to vector<2xf32>
    %34 = vector.shape_cast %33 : vector<2xf32> to vector<2x1xf32>
    %35 = math.log %34 : vector<2x1xf32>
    %36 = vector.broadcast %35 : vector<2x1xf32> to vector<2x8xf32>
    %37 = arith.subf %31, %36 : vector<2x8xf32>
    %c0_21 = arith.constant 0 : index
    %c0_22 = arith.constant 0 : index
    %38 = vector.load %arg8[%c0_21, %c0_22] : memref<2x8xf32, #tpu.memory_space<vmem>>, vector<2x8xf32>
    tpu.vector_store %arg8[%c0_21, %c0_22], %37 {strides = array<i32>} : memref<2x8xf32, #tpu.memory_space<vmem>>, vector<2x8xf32>,
    return
  }
  func.func @transform_0(%arg0: i32) -> (i32, i32) {
    %c0_i32 = arith.constant 0 : i32
    %c0_i32_0 = arith.constant 0 : i32
    return %arg0, %c0_i32 : i32, i32
  }
  func.func @transform_1(%arg0: i32) -> (i32, i32) {
    %c0_i32 = arith.constant 0 : i32
    %c0_i32_0 = arith.constant 0 : i32
    return %arg0, %c0_i32 : i32, i32
  }
  func.func @transform_2(%arg0: i32) -> (i32, i32) {
    %c0_i32 = arith.constant 0 : i32
    %c0_i32_0 = arith.constant 0 : i32
    %c0_i32_1 = arith.constant 0 : i32
    return %c0_i32, %c0_i32_0 : i32, i32
  }
  func.func @transform_3(%arg0: i32) -> (i32, i32) {
    %c0_i32 = arith.constant 0 : i32
    %c0_i32_0 = arith.constant 0 : i32
    %c0_i32_1 = arith.constant 0 : i32
    return %c0_i32, %c0_i32_0 : i32, i32
  }
  func.func @transform_4(%arg0: i32) -> (i32, i32) {
    %c0_i32 = arith.constant 0 : i32
    %c0_i32_0 = arith.constant 0 : i32
    %c0_i32_1 = arith.constant 0 : i32
    return %c0_i32, %c0_i32_0 : i32, i32
  }
  func.func @transform_5(%arg0: i32) -> (i32, i32) {
    %c0_i32 = arith.constant 0 : i32
    %c0_i32_0 = arith.constant 0 : i32
    %c0_i32_1 = arith.constant 0 : i32
    return %c0_i32, %c0_i32_0 : i32, i32
  }
  func.func @transform_6(%arg0: i32) -> (i32, i32) {
    %c0_i32 = arith.constant 0 : i32
    %c0_i32_0 = arith.constant 0 : i32
    %c0_i32_1 = arith.constant 0 : i32
    return %c0_i32, %c0_i32_0 : i32, i32
  }
  func.func @transform_7(%arg0: i32) -> (i32, i32) {
    %c0_i32 = arith.constant 0 : i32
    %c0_i32_0 = arith.constant 0 : i32
    return %arg0, %c0_i32 : i32, i32
  }
}

module attributes {stable_mosaic.version = 11 : i64} {
  func.func @mlp_a_kernel(%arg0: i32, %arg1: memref<2x64xf32, #tpu.memory_space<vmem>>, %arg2: memref<2x8xf32, #tpu.memory_space<vmem>>, %arg3: memref<64x128xbf16, #tpu.memory_space<vmem>>, %arg4: memref<8x128xbf16, #tpu.memory_space<vmem>>, %arg5: memref<1x128xf32, #tpu.memory_space<vmem>>, %arg6: memref<128x8xbf16, #tpu.memory_space<vmem>>, %arg7: memref<1x8xf32, #tpu.memory_space<vmem>>, %arg8: memref<2x8xf32, #tpu.memory_space<vmem>>) attributes {dimension_semantics = [#tpu.dimension_semantics<parallel>], iteration_bounds = array<i64: 1>, scalar_prefetch = 0 : i64, scratch_operands = 0 : i64, tpu.core_type = #tpu.core_type<tc>, window_params = [{transform_indices = @transform_0, window_bounds = array<i64: 2, 64>}, {transform_indices = @transform_1, window_bounds = array<i64: 2, 8>}, {pipeline_mode = #tpu.pipeline_mode<synchronous>, transform_indices = @transform_2, window_bounds = array<i64: 64, 128>}, {pipeline_mode = #tpu.pipeline_mode<synchronous>, transform_indices = @transform_3, window_bounds = array<i64: 8, 128>}, {pipeline_mode = #tpu.pipeline_mode<synchronous>, transform_indices = @transform_4, window_bounds = array<i64: 1, 128>}, {pipeline_mode = #tpu.pipeline_mode<synchronous>, transform_indices = @transform_5, window_bounds = array<i64: 128, 8>}, {pipeline_mode = #tpu.pipeline_mode<synchronous>, transform_indices = @transform_6, window_bounds = array<i64: 1, 8>}, {transform_indices = @transform_7, window_bounds = array<i64: 2, 8>}]} {
    %c0 = arith.constant 0 : index
    %c0_0 = arith.constant 0 : index
    %0 = vector.load %arg1[%c0, %c0_0] : memref<2x64xf32, #tpu.memory_space<vmem>>, vector<2x64xf32>
    %1 = arith.truncf %0 : vector<2x64xf32> to vector<2x64xbf16>
    %c0_1 = arith.constant 0 : index
    %c0_2 = arith.constant 0 : index
    %2 = vector.load %arg3[%c0_1, %c0_2] : memref<64x128xbf16, #tpu.memory_space<vmem>>, vector<64x128xbf16>
    %cst = arith.constant dense<0.000000e+00> : vector<2x128xf32>
    %3 = tpu.matmul %1, %2, %cst {dimension_numbers = #tpu.dot_dimension_numbers<[1], [0], [0], [1], [0, 0, 1, 1], [], []>} : vector<2x64xbf16>, vector<64x128xbf16>, vector<2x128xf32> -> vector<2x128xf32>
    %c0_3 = arith.constant 0 : index
    %c0_4 = arith.constant 0 : index
    %4 = vector.load %arg2[%c0_3, %c0_4] : memref<2x8xf32, #tpu.memory_space<vmem>>, vector<2x8xf32>
    %5 = arith.truncf %4 : vector<2x8xf32> to vector<2x8xbf16>
    %c0_5 = arith.constant 0 : index
    %c0_6 = arith.constant 0 : index
    %6 = vector.load %arg4[%c0_5, %c0_6] : memref<8x128xbf16, #tpu.memory_space<vmem>>, vector<8x128xbf16>
    %cst_7 = arith.constant dense<0.000000e+00> : vector<2x128xf32>
    %7 = tpu.matmul %5, %6, %cst_7 {dimension_numbers = #tpu.dot_dimension_numbers<[1], [0], [0], [1], [0, 0, 1, 1], [], []>} : vector<2x8xbf16>, vector<8x128xbf16>, vector<2x128xf32> -> vector<2x128xf32>
    %8 = arith.addf %3, %7 : vector<2x128xf32>
    %c0_8 = arith.constant 0 : index
    %c0_9 = arith.constant 0 : index
    %9 = vector.load %arg5[%c0_8, %c0_9] : memref<1x128xf32, #tpu.memory_space<vmem>>, vector<1x128xf32>
    %10 = vector.broadcast %9 : vector<1x128xf32> to vector<2x128xf32>
    %11 = arith.addf %8, %10 : vector<2x128xf32>
    %cst_10 = arith.constant 0.000000e+00 : f32
    %12 = vector.broadcast %cst_10 : f32 to vector<2x128xf32>
    %13 = arith.cmpf ogt, %11, %12 : vector<2x128xf32>
    %cst_11 = arith.constant 0.00999999977 : f32
    %14 = vector.broadcast %cst_11 : f32 to vector<2x128xf32>
    %15 = arith.mulf %14, %11 : vector<2x128xf32>
    %16 = arith.select %13, %11, %15 : vector<2x128xi1>, vector<2x128xf32>
    %17 = arith.truncf %16 : vector<2x128xf32> to vector<2x128xbf16>
    %c0_12 = arith.constant 0 : index
    %c0_13 = arith.constant 0 : index
    %18 = vector.load %arg6[%c0_12, %c0_13] : memref<128x8xbf16, #tpu.memory_space<vmem>>, vector<128x8xbf16>
    %cst_14 = arith.constant dense<0.000000e+00> : vector<2x8xf32>
    %19 = tpu.matmul %17, %18, %cst_14 {dimension_numbers = #tpu.dot_dimension_numbers<[1], [0], [0], [1], [0, 0, 1, 1], [], []>} : vector<2x128xbf16>, vector<128x8xbf16>, vector<2x8xf32> -> vector<2x8xf32>
    %c0_15 = arith.constant 0 : index
    %c0_16 = arith.constant 0 : index
    %20 = vector.load %arg7[%c0_15, %c0_16] : memref<1x8xf32, #tpu.memory_space<vmem>>, vector<1x8xf32>
    %21 = vector.broadcast %20 : vector<1x8xf32> to vector<2x8xf32>
    %22 = arith.addf %19, %21 : vector<2x8xf32>
    %cst_17 = arith.constant 0.000000e+00 : f32
    %23 = vector.broadcast %cst_17 : f32 to vector<2x8xf32>
    %24 = arith.cmpf ogt, %22, %23 : vector<2x8xf32>
    %cst_18 = arith.constant 0.00999999977 : f32
    %25 = vector.broadcast %cst_18 : f32 to vector<2x8xf32>
    %26 = arith.mulf %25, %22 : vector<2x8xf32>
    %27 = arith.select %24, %22, %26 : vector<2x8xi1>, vector<2x8xf32>
    %cst_19 = arith.constant dense<0xFF800000> : vector<2xf32>
    %28 = vector.multi_reduction <maximumf>, %27, %cst_19 [1] : vector<2x8xf32> to vector<2xf32>
    %29 = vector.shape_cast %28 : vector<2xf32> to vector<2x1xf32>
    %30 = vector.broadcast %29 : vector<2x1xf32> to vector<2x8xf32>
    %31 = arith.subf %27, %30 : vector<2x8xf32>
    %32 = math.exp %31 : vector<2x8xf32>
    %cst_20 = arith.constant dense<0.000000e+00> : vector<2xf32>
    %33 = vector.multi_reduction <add>, %32, %cst_20 [1] : vector<2x8xf32> to vector<2xf32>
    %34 = vector.shape_cast %33 : vector<2xf32> to vector<2x1xf32>
    %35 = math.log %34 : vector<2x1xf32>
    %36 = vector.broadcast %35 : vector<2x1xf32> to vector<2x8xf32>
    %37 = arith.subf %31, %36 : vector<2x8xf32>
    %c0_21 = arith.constant 0 : index
    %c0_22 = arith.constant 0 : index
    %38 = vector.load %arg8[%c0_21, %c0_22] : memref<2x8xf32, #tpu.memory_space<vmem>>, vector<2x8xf32>
    tpu.vector_store %arg8[%c0_21, %c0_22], %37 {strides = array<i32>} : memref<2x8xf32, #tpu.memory_space<vmem>>, vector<2x8xf32>,
    return
  }
  func.func @transform_0(%arg0: i32) -> (i32, i32) {
    %c0_i32 = arith.constant 0 : i32
    %c0_i32_0 = arith.constant 0 : i32
    return %arg0, %c0_i32 : i32, i32
  }
  func.func @transform_1(%arg0: i32) -> (i32, i32) {
    %c0_i32 = arith.constant 0 : i32
    %c0_i32_0 = arith.constant 0 : i32
    return %arg0, %c0_i32 : i32, i32
  }
  func.func @transform_2(%arg0: i32) -> (i32, i32) {
    %c0_i32 = arith.constant 0 : i32
    %c0_i32_0 = arith.constant 0 : i32
    %c0_i32_1 = arith.constant 0 : i32
    return %c0_i32, %c0_i32_0 : i32, i32
  }
  func.func @transform_3(%arg0: i32) -> (i32, i32) {
    %c0_i32 = arith.constant 0 : i32
    %c0_i32_0 = arith.constant 0 : i32
    %c0_i32_1 = arith.constant 0 : i32
    return %c0_i32, %c0_i32_0 : i32, i32
  }
  func.func @transform_4(%arg0: i32) -> (i32, i32) {
    %c0_i32 = arith.constant 0 : i32
    %c0_i32_0 = arith.constant 0 : i32
    %c0_i32_1 = arith.constant 0 : i32
    return %c0_i32, %c0_i32_0 : i32, i32
  }
  func.func @transform_5(%arg0: i32) -> (i32, i32) {
    %c0_i32 = arith.constant 0 : i32
    %c0_i32_0 = arith.constant 0 : i32
    %c0_i32_1 = arith.constant 0 : i32
    return %c0_i32, %c0_i32_0 : i32, i32
  }
  func.func @transform_6(%arg0: i32) -> (i32, i32) {
    %c0_i32 = arith.constant 0 : i32
    %c0_i32_0 = arith.constant 0 : i32
    %c0_i32_1 = arith.constant 0 : i32
    return %c0_i32, %c0_i32_0 : i32, i32
  }
  func.func @transform_7(%arg0: i32) -> (i32, i32) {
    %c0_i32 = arith.constant 0 : i32
    %c0_i32_0 = arith.constant 0 : i32
    return %arg0, %c0_i32 : i32, i32
  }
}

</mosaic_0001>

<llo_original>
// kernel: tpu_custom_call.1
$region0: #{tpu_custom_call.1}
  #allocation0 [shape = 'u32[]', space=smem, size = 0x4, offset = 0x4, fixed_abs, tag = 'smem constant byte address 0x4 - core index']
  #allocation1 [shape = 'u32[144,128]{1,0:T(1,128)}', space=vmem, size = 0x12000, scoped, tag = 'internal scratch']
  %s0 = inlined_call_operand.vmem [shape: f32[2,64], index: 0, kind: input, shape index: {}]
  %s1 = inlined_call_operand.vmem [shape: f32[2,8], index: 1, kind: input, shape index: {}]
  %s2 = inlined_call_operand.vmem [shape: bf16[64,128], index: 2, kind: input, shape index: {}]
  %s3 = inlined_call_operand.vmem [shape: bf16[8,128], index: 3, kind: input, shape index: {}]
  %s4 = inlined_call_operand.vmem [shape: f32[1,128], index: 4, kind: input, shape index: {}]
  %s5 = inlined_call_operand.vmem [shape: bf16[128,8], index: 5, kind: input, shape index: {}]
  %s6 = inlined_call_operand.vmem [shape: f32[1,8], index: 6, kind: input, shape index: {}]
  %s7 = inlined_call_operand.hbm [shape: f32[2,8], index: 7, kind: output, shape index: {}]
  %s8 = sld [smem:[#allocation0]]
  $region38: #{tpu_custom_call.1} parent=0
    _
  %s10 = ssub.s32 1, %s8
  %s11 = scalar_select 0, %s10, %s8
  $region1: #{tpu_custom_call.1} parent=0
    #allocation2 [shape = 'u8[1024]{0}', space=vmem, size = 0x400, scoped, tag = 'output window, operand 0, single buffered']
    #allocation3 [shape = 's32[1]{0}', space=sflag, size = 0x4, scoped, tag = 'scoped memory for tpu_custom_call.1']
    %12 = vsyncpa [#allocation3], 0
    // Predicated region
    $region2: #{tpu_custom_call.1} parent=1 // pred_check
      _
    $region3: #{tpu_custom_call.1} parent=1 // pred_check_branch
      %14 = sbr.rel (0) target = $region5
    $region4: #{tpu_custom_call.1} parent=1 // pred_region
      _
    $region5: #{tpu_custom_call.1} parent=1 // pred_fallthru
      _
    // Predicated region
    $region6: #{tpu_custom_call.1} parent=1 // pred_check
      _
    $region7: #{tpu_custom_call.1} parent=1 // pred_check_branch
      %16 = sbr.rel (0) target = $region9
    $region8: #{tpu_custom_call.1} parent=1 // pred_region
      _
    $region9: #{tpu_custom_call.1} parent=1 // pred_fallthru
      _
    // Predicated region
    $region10: #{tpu_custom_call.1} parent=1 // pred_check
      _
    $region11: #{tpu_custom_call.1} parent=1 // pred_check_branch
      %18 = sbr.rel (0) target = $region13
    $region12: #{tpu_custom_call.1} parent=1 // pred_region
      _
    $region13: #{tpu_custom_call.1} parent=1 // pred_fallthru
      _
    // Predicated region
    $region14: #{tpu_custom_call.1} parent=1 // pred_check
      _
    $region15: #{tpu_custom_call.1} parent=1 // pred_check_branch
      %20 = sbr.rel (0) target = $region17
    $region16: #{tpu_custom_call.1} parent=1 // pred_region
      _
    $region17: #{tpu_custom_call.1} parent=1 // pred_fallthru
      _
    // Predicated region
    $region18: #{tpu_custom_call.1} parent=1 // pred_check
      _
    $region19: #{tpu_custom_call.1} parent=1 // pred_check_branch
      %22 = sbr.rel (0) target = $region21
    $region20: #{tpu_custom_call.1} parent=1 // pred_region
      _
    $region21: #{tpu_custom_call.1} parent=1 // pred_fallthru
      _
    // Predicated region
    $region22: #{tpu_custom_call.1} parent=1 // pred_check
      _
    $region23: #{tpu_custom_call.1} parent=1 // pred_check_branch
      %24 = sbr.rel (0) target = $region25
    $region24: #{tpu_custom_call.1} parent=1 // pred_region
      _
    $region25: #{tpu_custom_call.1} parent=1 // pred_fallthru
      _
    // Predicated region
    $region26: #{tpu_custom_call.1} parent=1 // pred_check
      _
    $region27: #{tpu_custom_call.1} parent=1 // pred_check_branch
      %26 = sbr.rel (0) target = $region29
    $region28: #{tpu_custom_call.1} parent=1 // pred_region
      _
    $region29: #{tpu_custom_call.1} parent=1 // pred_fallthru
      _
    %v28 = vld [vmem:[%s0] sm:$0x3]
    %v29 = vpack.c.bf16 %v28, %v28
    %v30 = vld [vmem:[%s2] sm:$0xf]
    %v31 = vld [vmem:[%s2 + $0x4] sm:$0xf]
    %v32 = vld [vmem:[%s2 + $0x8] sm:$0xf]
    %v33 = vld [vmem:[%s2 + $0xc] sm:$0xf]
    %v34 = vld [vmem:[%s2 + $0x10] sm:$0xf]
    %v35 = vld [vmem:[%s2 + $0x14] sm:$0xf]
    %v36 = vld [vmem:[%s2 + $0x18] sm:$0xf]
    %v37 = vld [vmem:[%s2 + $0x1c] sm:$0xf]
    %v38 = vld [vmem:[%s1] sm:$0x3]
    %v39 = vpack.c.bf16 %v38, %v38
    %v40 = vld [vmem:[%s3] sm:$0xf]
    %vm41 = vcmask 64512
    %v43 = vsel %vm41, %v39, 0
    %vm45 = vcmask 1043456
    %v47 = vsel %vm45, %v40, 0
    %49 = vmatprep.subr.bf16.mxu0 0
    %50 = vmatpush1.bf16.msra.mxu0 %v47
    %51 = vmatprep.subr.bf16.mxu0 0
    %52 = vmatpush1.bf16.msra.mxu0 0
    %53 = vmatprep.subr.bf16.mxu0 0
    %54 = vmatpush1.bf16.msra.mxu0 0
    %55 = vmatprep.subr.bf16.mxu0 0
    %56 = vmatpush1.bf16.msra.mxu0 0
    %57 = vmatprep.subr.bf16.mxu0 0
    %58 = vmatpush1.bf16.msra.mxu0 0
    %59 = vmatprep.subr.bf16.mxu0 0
    %60 = vmatpush1.bf16.msra.mxu0 0
    %61 = vmatprep.subr.bf16.mxu0 0
    %62 = vmatpush1.bf16.msra.mxu0 0
    %63 = vmatprep.subr.bf16.mxu0 0
    %64 = vmatpush1.bf16.msra.mxu0 0
    %65 = vmatprep.subr.bf16.mxu0 0
    %66 = vmatpush1.bf16.msra.mxu0 0
    %67 = vmatprep.subr.bf16.mxu0 0
    %68 = vmatpush1.bf16.msra.mxu0 0
    %69 = vmatprep.subr.bf16.mxu0 0
    %70 = vmatpush1.bf16.msra.mxu0 0
    %71 = vmatprep.subr.bf16.mxu0 0
    %72 = vmatpush1.bf16.msra.mxu0 0
    %73 = vmatprep.subr.bf16.mxu0 0
    %74 = vmatpush1.bf16.msra.mxu0 0
    %75 = vmatprep.subr.bf16.mxu0 0
    %76 = vmatpush1.bf16.msra.mxu0 0
    %77 = vmatprep.subr.bf16.mxu0 0
    %78 = vmatpush1.bf16.msra.mxu0 0
    %79 = vmatprep.subr.bf16.mxu0 0
    %80 = vmatpush1.bf16.msra.mxu0 0
    %81 = vmatprep.mubr.bf16.mxu0 0
    %82 = vmatmul.mubr.bf16.gmra.mrb[0].mxu0 %v43
    %v83 = vpop.f32.mrb[0].mxu0
    %v84 = vadd.f32 0.0, %v83
    %v85 = vpop.f32.mrb[0].mxu0
    %v86 = vpop.f32.mrb[0].mxu0
    %v87 = vpop.f32.mrb[0].mxu0
    %88 = vdwg.mxu0
    %v97 = vunpack.c.l.b16 %v30
    %v98 = vunpack.c.l.b16 %v31
    %v99 = vunpack.c.l.b16 %v32
    %v100 = vunpack.c.l.b16 %v33
    %v101 = vunpack.c.l.b16 %v34
    %v102 = vunpack.c.l.b16 %v35
    %v103 = vunpack.c.l.b16 %v36
    %v104 = vunpack.c.l.b16 %v37
    %v105 = vpack.c.b16 %v98, %v97
    %v106 = vpack.c.b16 %v100, %v99
    %v107 = vpack.c.b16 %v102, %v101
    %v108 = vpack.c.b16 %v104, %v103
    %vm113 = vcmask 523264
    %v115 = vsel %vm113, %v29, 0
    %117 = vmatprep.subr.bf16.mxu0 0
    %118 = vmatpush1.bf16.msra.mxu0 %v105
    %119 = vmatprep.subr.bf16.mxu0 0
    %120 = vmatpush1.bf16.msra.mxu0 %v106
    %121 = vmatprep.subr.bf16.mxu0 0
    %122 = vmatpush1.bf16.msra.mxu0 %v107
    %123 = vmatprep.subr.bf16.mxu0 0
    %124 = vmatpush1.bf16.msra.mxu0 %v108
    %125 = vmatprep.subr.bf16.mxu0 0
    %126 = vmatpush1.bf16.msra.mxu0 0
    %127 = vmatprep.subr.bf16.mxu0 0
    %128 = vmatpush1.bf16.msra.mxu0 0
    %129 = vmatprep.subr.bf16.mxu0 0
    %130 = vmatpush1.bf16.msra.mxu0 0
    %131 = vmatprep.subr.bf16.mxu0 0
    %132 = vmatpush1.bf16.msra.mxu0 0
    %133 = vmatprep.subr.bf16.mxu0 0
    %134 = vmatpush1.bf16.msra.mxu0 0
    %135 = vmatprep.subr.bf16.mxu0 0
    %136 = vmatpush1.bf16.msra.mxu0 0
    %137 = vmatprep.subr.bf16.mxu0 0
    %138 = vmatpush1.bf16.msra.mxu0 0
    %139 = vmatprep.subr.bf16.mxu0 0
    %140 = vmatpush1.bf16.msra.mxu0 0
    %141 = vmatprep.subr.bf16.mxu0 0
    %142 = vmatpush1.bf16.msra.mxu0 0
    %143 = vmatprep.subr.bf16.mxu0 0
    %144 = vmatpush1.bf16.msra.mxu0 0
    %145 = vmatprep.subr.bf16.mxu0 0
    %146 = vmatpush1.bf16.msra.mxu0 0
    %147 = vmatprep.subr.bf16.mxu0 0
    %148 = vmatpush1.bf16.msra.mxu0 0
    %149 = vmatprep.mubr.bf16.mxu0 0
    %150 = vmatmul.mubr.bf16.gmra.mrb[0].mxu0 %v115
    %v151 = vpop.f32.mrb[0].mxu0
    %v152 = vadd.f32 %v84, %v151
    %v153 = vpop.f32.mrb[0].mxu0
    %v154 = vpop.f32.mrb[0].mxu0
    %v155 = vpop.f32.mrb[0].mxu0
    %156 = vdwg.mxu0
    %v157 = vld [vmem:[%s4] sm:$0x1]
    %v159 = vlaneseq
    %v160 = vshrl.u32 %v159, 7
    %v161 = vsub.s32 0, %v160
    %v162 = vrot.slane %v157, %v161
    %v164 = vadd.f32 %v152, %v162
    %vm165 = vcmp.gt.f32.partialorder %v164, 0.0
    %v166 = vmul.f32 %v164, 0.01
    %v167 = vsel %vm165, %v164, %v166
    %v168 = vpack.c.bf16 %v167, %v167
    %v169 = vld [vmem:[%s5] sm:$0xf]
    %v170 = vld [vmem:[%s5 + $0x4] sm:$0xf]
    %v171 = vld [vmem:[%s5 + $0x8] sm:$0xf]
    %v172 = vld [vmem:[%s5 + $0xc] sm:$0xf]
    %v173 = vld [vmem:[%s5 + $0x10] sm:$0xf]
    %v174 = vld [vmem:[%s5 + $0x14] sm:$0xf]
    %v175 = vld [vmem:[%s5 + $0x18] sm:$0xf]
    %v176 = vld [vmem:[%s5 + $0x1c] sm:$0xf]
    %v177 = vld [vmem:[%s5 + $0x20] sm:$0xf]
    %v178 = vld [vmem:[%s5 + $0x24] sm:$0xf]
    %v179 = vld [vmem:[%s5 + $0x28] sm:$0xf]
    %v180 = vld [vmem:[%s5 + $0x2c] sm:$0xf]
    %v181 = vld [vmem:[%s5 + $0x30] sm:$0xf]
    %v182 = vld [vmem:[%s5 + $0x34] sm:$0xf]
    %v183 = vld [vmem:[%s5 + $0x38] sm:$0xf]
    %v184 = vld [vmem:[%s5 + $0x3c] sm:$0xf]
    %v185 = vld [vmem:[%s6] sm:$0x1]
    %v187 = vlaneseq
    %v188 = vshrl.u32 %v187, 7
    %v189 = vsub.s32 0, %v188
    %v190 = vrot.slane %v185, %v189
    %v208 = vunpack.c.l.b16 %v169
    %v209 = vunpack.c.l.b16 %v170
    %v210 = vunpack.c.l.b16 %v171
    %v211 = vunpack.c.l.b16 %v172
    %v212 = vunpack.c.l.b16 %v173
    %v213 = vunpack.c.l.b16 %v174
    %v214 = vunpack.c.l.b16 %v175
    %v215 = vunpack.c.l.b16 %v176
    %v216 = vunpack.c.l.b16 %v177
    %v217 = vunpack.c.l.b16 %v178
    %v218 = vunpack.c.l.b16 %v179
    %v219 = vunpack.c.l.b16 %v180
    %v220 = vunpack.c.l.b16 %v181
    %v221 = vunpack.c.l.b16 %v182
    %v222 = vunpack.c.l.b16 %v183
    %v223 = vunpack.c.l.b16 %v184
    %v224 = vpack.c.b16 %v209, %v208
    %v225 = vpack.c.b16 %v211, %v210
    %v226 = vpack.c.b16 %v213, %v212
    %v227 = vpack.c.b16 %v215, %v214
    %v228 = vpack.c.b16 %v217, %v216
    %v229 = vpack.c.b16 %v219, %v218
    %v230 = vpack.c.b16 %v221, %v220
    %v231 = vpack.c.b16 %v223, %v222
    %240 = vmatprep.subr.bf16.mxu0 0
    %241 = vmatpush1.bf16.msra.mxu0 %v224
    %242 = vmatprep.subr.bf16.mxu0 0
    %243 = vmatpush1.bf16.msra.mxu0 %v225
    %244 = vmatprep.subr.bf16.mxu0 0
    %245 = vmatpush1.bf16.msra.mxu0 %v226
    %246 = vmatprep.subr.bf16.mxu0 0
    %247 = vmatpush1.bf16.msra.mxu0 %v227
    %248 = vmatprep.subr.bf16.mxu0 0
    %249 = vmatpush1.bf16.msra.mxu0 %v228
    %250 = vmatprep.subr.bf16.mxu0 0
    %251 = vmatpush1.bf16.msra.mxu0 %v229
    %252 = vmatprep.subr.bf16.mxu0 0
    %253 = vmatpush1.bf16.msra.mxu0 %v230
    %254 = vmatprep.subr.bf16.mxu0 0
    %255 = vmatpush1.bf16.msra.mxu0 %v231
    %256 = vmatprep.subr.bf16.mxu0 0
    %257 = vmatpush1.bf16.msra.mxu0 0
    %258 = vmatprep.subr.bf16.mxu0 0
    %259 = vmatpush1.bf16.msra.mxu0 0
    %260 = vmatprep.subr.bf16.mxu0 0
    %261 = vmatpush1.bf16.msra.mxu0 0
    %262 = vmatprep.subr.bf16.mxu0 0
    %263 = vmatpush1.bf16.msra.mxu0 0
    %264 = vmatprep.subr.bf16.mxu0 0
    %265 = vmatpush1.bf16.msra.mxu0 0
    %266 = vmatprep.subr.bf16.mxu0 0
    %267 = vmatpush1.bf16.msra.mxu0 0
    %268 = vmatprep.subr.bf16.mxu0 0
    %269 = vmatpush1.bf16.msra.mxu0 0
    %270 = vmatprep.subr.bf16.mxu0 0
    %271 = vmatpush1.bf16.msra.mxu0 0
    %272 = vmatprep.mubr.bf16.mxu0 0
    %273 = vmatmul.mubr.bf16.gmra.mrb[0].mxu0 %v168
    %v274 = vpop.f32.mrb[0].mxu0
    %v275 = vadd.f32 %v190, %v274
    %v276 = vpop.f32.mrb[0].mxu0
    %v277 = vpop.f32.mrb[0].mxu0
    %v278 = vpop.f32.mrb[0].mxu0
    %279 = vdwg.mxu0
    %vm280 = vcmp.gt.f32.partialorder %v275, 0.0
    %v281 = vmul.f32 %v275, 0.01
    %v282 = vsel %vm280, %v275, %v281
    %vm283 = vcmask 58368
    %v284 = vsel %vm283, %v282, -inf
    %285 = vmax.xlane.f32.xlu0 %v284
    %v286 = vpop.xlane.xlu0 %285
    %v287 = vsub.f32 %v282, %v286
    %v288 = vmul.f32 %v287, 1.442695
    %v289 = vpow.pop %v288
    %v290 = vsel %vm283, %v289, 0.0
    %291 = vadd.xlane.f32.xlu0 %v290
    %v292 = vpop.xlane.xlu0 %291
    %v293 = vlog2.pop %v292
    %v294 = vmul.f32 %v293, 0.6931472
    %v295 = vsub.f32 %v287, %v294
    %296 = vst.msk [vmem:[#allocation2] sm:$0x3] %vm283, %v295
    // Predicated region
    $region30: #{tpu_custom_call.1} parent=1 // pred_check
      _
    $region31: #{tpu_custom_call.1} parent=1 // pred_check_branch
      %298 = sbr.rel (0) target = $region33
    $region32: #{tpu_custom_call.1} parent=1 // pred_region
      %s300 = ssub.s32 32, 32
      %301 = vsyncadd [#allocation3], %s300
      %s303 = sshll.u32 [#allocation2], 4
      %s304 = int_to_ptr.vmem [resolvable:$true] %s303
      %306 = dma.vmem_to_hbm [thread:$0]  %s304, 32, %s7, [#allocation3]
    $region33: #{tpu_custom_call.1} parent=1 // pred_fallthru
      _
    // Predicated region
    $region34: #{tpu_custom_call.1} parent=1 // pred_check
      _
    $region35: #{tpu_custom_call.1} parent=1 // pred_check_branch
      %308 = sbr.rel (0) target = $region37
    $region36: #{tpu_custom_call.1} parent=1 // pred_region
      %309 = dma.done [#allocation3], 32
    $region37: #{tpu_custom_call.1} parent=1 // pred_fallthru
      _
    %310 = vsyncpa [#allocation3], 1

// kernel: tpu_custom_call.1
$region0: #{tpu_custom_call.1}
  #allocation0 [shape = 'u32[]', space=smem, size = 0x4, offset = 0x4, fixed_abs, tag = 'smem constant byte address 0x4 - core index']
  #allocation1 [shape = 'u32[144,128]{1,0:T(1,128)}', space=vmem, size = 0x12000, scoped, tag = 'internal scratch']
  %s0 = inlined_call_operand.vmem [shape: f32[2,64], index: 0, kind: input, shape index: {}]
  %s1 = inlined_call_operand.vmem [shape: f32[2,8], index: 1, kind: input, shape index: {}]
  %s2 = inlined_call_operand.vmem [shape: bf16[64,128], index: 2, kind: input, shape index: {}]
  %s3 = inlined_call_operand.vmem [shape: bf16[8,128], index: 3, kind: input, shape index: {}]
  %s4 = inlined_call_operand.vmem [shape: f32[1,128], index: 4, kind: input, shape index: {}]
  %s5 = inlined_call_operand.vmem [shape: bf16[128,8], index: 5, kind: input, shape index: {}]
  %s6 = inlined_call_operand.vmem [shape: f32[1,8], index: 6, kind: input, shape index: {}]
  %s7 = inlined_call_operand.hbm [shape: f32[2,8], index: 7, kind: output, shape index: {}]
  %s8 = sld [smem:[#allocation0]]
  $region38: #{tpu_custom_call.1} parent=0
    _
  %s10 = ssub.s32 1, %s8
  %s11 = scalar_select 0, %s10, %s8
  $region1: #{tpu_custom_call.1} parent=0
    #allocation2 [shape = 'u8[1024]{0}', space=vmem, size = 0x400, scoped, tag = 'output window, operand 0, single buffered']
    #allocation3 [shape = 's32[1]{0}', space=sflag, size = 0x4, scoped, tag = 'scoped memory for tpu_custom_call.1']
    %12 = vsyncpa [#allocation3], 0
    // Predicated region
    $region2: #{tpu_custom_call.1} parent=1 // pred_check
      _
    $region3: #{tpu_custom_call.1} parent=1 // pred_check_branch
      %14 = sbr.rel (0) target = $region5
    $region4: #{tpu_custom_call.1} parent=1 // pred_region
      _
    $region5: #{tpu_custom_call.1} parent=1 // pred_fallthru
      _
    // Predicated region
    $region6: #{tpu_custom_call.1} parent=1 // pred_check
      _
    $region7: #{tpu_custom_call.1} parent=1 // pred_check_branch
      %16 = sbr.rel (0) target = $region9
    $region8: #{tpu_custom_call.1} parent=1 // pred_region
      _
    $region9: #{tpu_custom_call.1} parent=1 // pred_fallthru
      _
    // Predicated region
    $region10: #{tpu_custom_call.1} parent=1 // pred_check
      _
    $region11: #{tpu_custom_call.1} parent=1 // pred_check_branch
      %18 = sbr.rel (0) target = $region13
    $region12: #{tpu_custom_call.1} parent=1 // pred_region
      _
    $region13: #{tpu_custom_call.1} parent=1 // pred_fallthru
      _
    // Predicated region
    $region14: #{tpu_custom_call.1} parent=1 // pred_check
      _
    $region15: #{tpu_custom_call.1} parent=1 // pred_check_branch
      %20 = sbr.rel (0) target = $region17
    $region16: #{tpu_custom_call.1} parent=1 // pred_region
      _
    $region17: #{tpu_custom_call.1} parent=1 // pred_fallthru
      _
    // Predicated region
    $region18: #{tpu_custom_call.1} parent=1 // pred_check
      _
    $region19: #{tpu_custom_call.1} parent=1 // pred_check_branch
      %22 = sbr.rel (0) target = $region21
    $region20: #{tpu_custom_call.1} parent=1 // pred_region
      _
    $region21: #{tpu_custom_call.1} parent=1 // pred_fallthru
      _
    // Predicated region
    $region22: #{tpu_custom_call.1} parent=1 // pred_check
      _
    $region23: #{tpu_custom_call.1} parent=1 // pred_check_branch
      %24 = sbr.rel (0) target = $region25
    $region24: #{tpu_custom_call.1} parent=1 // pred_region
      _
    $region25: #{tpu_custom_call.1} parent=1 // pred_fallthru
      _
    // Predicated region
    $region26: #{tpu_custom_call.1} parent=1 // pred_check
      _
    $region27: #{tpu_custom_call.1} parent=1 // pred_check_branch
      %26 = sbr.rel (0) target = $region29
    $region28: #{tpu_custom_call.1} parent=1 // pred_region
      _
    $region29: #{tpu_custom_call.1} parent=1 // pred_fallthru
      _
    %v28 = vld [vmem:[%s0] sm:$0x3]
    %v29 = vpack.c.bf16 %v28, %v28
    %v30 = vld [vmem:[%s2] sm:$0xf]
    %v31 = vld [vmem:[%s2 + $0x4] sm:$0xf]
    %v32 = vld [vmem:[%s2 + $0x8] sm:$0xf]
    %v33 = vld [vmem:[%s2 + $0xc] sm:$0xf]
    %v34 = vld [vmem:[%s2 + $0x10] sm:$0xf]
    %v35 = vld [vmem:[%s2 + $0x14] sm:$0xf]
    %v36 = vld [vmem:[%s2 + $0x18] sm:$0xf]
    %v37 = vld [vmem:[%s2 + $0x1c] sm:$0xf]
    %v38 = vld [vmem:[%s1] sm:$0x3]
    %v39 = vpack.c.bf16 %v38, %v38
    %v40 = vld [vmem:[%s3] sm:$0xf]
    %vm41 = vcmask 64512
    %v43 = vsel %vm41, %v39, 0
    %vm45 = vcmask 1043456
    %v47 = vsel %vm45, %v40, 0
    %49 = vmatprep.subr.bf16.mxu0 0
    %50 = vmatpush1.bf16.msra.mxu0 %v47
    %51 = vmatprep.subr.bf16.mxu0 0
    %52 = vmatpush1.bf16.msra.mxu0 0
    %53 = vmatprep.subr.bf16.mxu0 0
    %54 = vmatpush1.bf16.msra.mxu0 0
    %55 = vmatprep.subr.bf16.mxu0 0
    %56 = vmatpush1.bf16.msra.mxu0 0
    %57 = vmatprep.subr.bf16.mxu0 0
    %58 = vmatpush1.bf16.msra.mxu0 0
    %59 = vmatprep.subr.bf16.mxu0 0
    %60 = vmatpush1.bf16.msra.mxu0 0
    %61 = vmatprep.subr.bf16.mxu0 0
    %62 = vmatpush1.bf16.msra.mxu0 0
    %63 = vmatprep.subr.bf16.mxu0 0
    %64 = vmatpush1.bf16.msra.mxu0 0
    %65 = vmatprep.subr.bf16.mxu0 0
    %66 = vmatpush1.bf16.msra.mxu0 0
    %67 = vmatprep.subr.bf16.mxu0 0
    %68 = vmatpush1.bf16.msra.mxu0 0
    %69 = vmatprep.subr.bf16.mxu0 0
    %70 = vmatpush1.bf16.msra.mxu0 0
    %71 = vmatprep.subr.bf16.mxu0 0
    %72 = vmatpush1.bf16.msra.mxu0 0
    %73 = vmatprep.subr.bf16.mxu0 0
    %74 = vmatpush1.bf16.msra.mxu0 0
    %75 = vmatprep.subr.bf16.mxu0 0
    %76 = vmatpush1.bf16.msra.mxu0 0
    %77 = vmatprep.subr.bf16.mxu0 0
    %78 = vmatpush1.bf16.msra.mxu0 0
    %79 = vmatprep.subr.bf16.mxu0 0
    %80 = vmatpush1.bf16.msra.mxu0 0
    %81 = vmatprep.mubr.bf16.mxu0 0
    %82 = vmatmul.mubr.bf16.gmra.mrb[0].mxu0 %v43
    %v83 = vpop.f32.mrb[0].mxu0
    %v84 = vadd.f32 0.0, %v83
    %v85 = vpop.f32.mrb[0].mxu0
    %v86 = vpop.f32.mrb[0].mxu0
    %v87 = vpop.f32.mrb[0].mxu0
    %88 = vdwg.mxu0
    %v97 = vunpack.c.l.b16 %v30
    %v98 = vunpack.c.l.b16 %v31
    %v99 = vunpack.c.l.b16 %v32
    %v100 = vunpack.c.l.b16 %v33
    %v101 = vunpack.c.l.b16 %v34
    %v102 = vunpack.c.l.b16 %v35
    %v103 = vunpack.c.l.b16 %v36
    %v104 = vunpack.c.l.b16 %v37
    %v105 = vpack.c.b16 %v98, %v97
    %v106 = vpack.c.b16 %v100, %v99
    %v107 = vpack.c.b16 %v102, %v101
    %v108 = vpack.c.b16 %v104, %v103
    %vm113 = vcmask 523264
    %v115 = vsel %vm113, %v29, 0
    %117 = vmatprep.subr.bf16.mxu0 0
    %118 = vmatpush1.bf16.msra.mxu0 %v105
    %119 = vmatprep.subr.bf16.mxu0 0
    %120 = vmatpush1.bf16.msra.mxu0 %v106
    %121 = vmatprep.subr.bf16.mxu0 0
    %122 = vmatpush1.bf16.msra.mxu0 %v107
    %123 = vmatprep.subr.bf16.mxu0 0
    %124 = vmatpush1.bf16.msra.mxu0 %v108
    %125 = vmatprep.subr.bf16.mxu0 0
    %126 = vmatpush1.bf16.msra.mxu0 0
    %127 = vmatprep.subr.bf16.mxu0 0
    %128 = vmatpush1.bf16.msra.mxu0 0
    %129 = vmatprep.subr.bf16.mxu0 0
    %130 = vmatpush1.bf16.msra.mxu0 0
    %131 = vmatprep.subr.bf16.mxu0 0
    %132 = vmatpush1.bf16.msra.mxu0 0
    %133 = vmatprep.subr.bf16.mxu0 0
    %134 = vmatpush1.bf16.msra.mxu0 0
    %135 = vmatprep.subr.bf16.mxu0 0
    %136 = vmatpush1.bf16.msra.mxu0 0
    %137 = vmatprep.subr.bf16.mxu0 0
    %138 = vmatpush1.bf16.msra.mxu0 0
    %139 = vmatprep.subr.bf16.mxu0 0
    %140 = vmatpush1.bf16.msra.mxu0 0
    %141 = vmatprep.subr.bf16.mxu0 0
    %142 = vmatpush1.bf16.msra.mxu0 0
    %143 = vmatprep.subr.bf16.mxu0 0
    %144 = vmatpush1.bf16.msra.mxu0 0
    %145 = vmatprep.subr.bf16.mxu0 0
    %146 = vmatpush1.bf16.msra.mxu0 0
    %147 = vmatprep.subr.bf16.mxu0 0
    %148 = vmatpush1.bf16.msra.mxu0 0
    %149 = vmatprep.mubr.bf16.mxu0 0
    %150 = vmatmul.mubr.bf16.gmra.mrb[0].mxu0 %v115
    %v151 = vpop.f32.mrb[0].mxu0
    %v152 = vadd.f32 %v84, %v151
    %v153 = vpop.f32.mrb[0].mxu0
    %v154 = vpop.f32.mrb[0].mxu0
    %v155 = vpop.f32.mrb[0].mxu0
    %156 = vdwg.mxu0
    %v157 = vld [vmem:[%s4] sm:$0x1]
    %v159 = vlaneseq
    %v160 = vshrl.u32 %v159, 7
    %v161 = vsub.s32 0, %v160
    %v162 = vrot.slane %v157, %v161
    %v164 = vadd.f32 %v152, %v162
    %vm165 = vcmp.gt.f32.partialorder %v164, 0.0
    %v166 = vmul.f32 %v164, 0.01
    %v167 = vsel %vm165, %v164, %v166
    %v168 = vpack.c.bf16 %v167, %v167
    %v169 = vld [vmem:[%s5] sm:$0xf]
    %v170 = vld [vmem:[%s5 + $0x4] sm:$0xf]
    %v171 = vld [vmem:[%s5 + $0x8] sm:$0xf]
    %v172 = vld [vmem:[%s5 + $0xc] sm:$0xf]
    %v173 = vld [vmem:[%s5 + $0x10] sm:$0xf]
    %v174 = vld [vmem:[%s5 + $0x14] sm:$0xf]
    %v175 = vld [vmem:[%s5 + $0x18] sm:$0xf]
    %v176 = vld [vmem:[%s5 + $0x1c] sm:$0xf]
    %v177 = vld [vmem:[%s5 + $0x20] sm:$0xf]
    %v178 = vld [vmem:[%s5 + $0x24] sm:$0xf]
    %v179 = vld [vmem:[%s5 + $0x28] sm:$0xf]
    %v180 = vld [vmem:[%s5 + $0x2c] sm:$0xf]
    %v181 = vld [vmem:[%s5 + $0x30] sm:$0xf]
    %v182 = vld [vmem:[%s5 + $0x34] sm:$0xf]
    %v183 = vld [vmem:[%s5 + $0x38] sm:$0xf]
    %v184 = vld [vmem:[%s5 + $0x3c] sm:$0xf]
    %v185 = vld [vmem:[%s6] sm:$0x1]
    %v187 = vlaneseq
    %v188 = vshrl.u32 %v187, 7
    %v189 = vsub.s32 0, %v188
    %v190 = vrot.slane %v185, %v189
    %v208 = vunpack.c.l.b16 %v169
    %v209 = vunpack.c.l.b16 %v170
    %v210 = vunpack.c.l.b16 %v171
    %v211 = vunpack.c.l.b16 %v172
    %v212 = vunpack.c.l.b16 %v173
    %v213 = vunpack.c.l.b16 %v174
    %v214 = vunpack.c.l.b16 %v175
    %v215 = vunpack.c.l.b16 %v176
    %v216 = vunpack.c.l.b16 %v177
    %v217 = vunpack.c.l.b16 %v178
    %v218 = vunpack.c.l.b16 %v179
    %v219 = vunpack.c.l.b16 %v180
    %v220 = vunpack.c.l.b16 %v181
    %v221 = vunpack.c.l.b16 %v182
    %v222 = vunpack.c.l.b16 %v183
    %v223 = vunpack.c.l.b16 %v184
    %v224 = vpack.c.b16 %v209, %v208
    %v225 = vpack.c.b16 %v211, %v210
    %v226 = vpack.c.b16 %v213, %v212
    %v227 = vpack.c.b16 %v215, %v214
    %v228 = vpack.c.b16 %v217, %v216
    %v229 = vpack.c.b16 %v219, %v218
    %v230 = vpack.c.b16 %v221, %v220
    %v231 = vpack.c.b16 %v223, %v222
    %240 = vmatprep.subr.bf16.mxu0 0
    %241 = vmatpush1.bf16.msra.mxu0 %v224
    %242 = vmatprep.subr.bf16.mxu0 0
    %243 = vmatpush1.bf16.msra.mxu0 %v225
    %244 = vmatprep.subr.bf16.mxu0 0
    %245 = vmatpush1.bf16.msra.mxu0 %v226
    %246 = vmatprep.subr.bf16.mxu0 0
    %247 = vmatpush1.bf16.msra.mxu0 %v227
    %248 = vmatprep.subr.bf16.mxu0 0
    %249 = vmatpush1.bf16.msra.mxu0 %v228
    %250 = vmatprep.subr.bf16.mxu0 0
    %251 = vmatpush1.bf16.msra.mxu0 %v229
    %252 = vmatprep.subr.bf16.mxu0 0
    %253 = vmatpush1.bf16.msra.mxu0 %v230
    %254 = vmatprep.subr.bf16.mxu0 0
    %255 = vmatpush1.bf16.msra.mxu0 %v231
    %256 = vmatprep.subr.bf16.mxu0 0
    %257 = vmatpush1.bf16.msra.mxu0 0
    %258 = vmatprep.subr.bf16.mxu0 0
    %259 = vmatpush1.bf16.msra.mxu0 0
    %260 = vmatprep.subr.bf16.mxu0 0
    %261 = vmatpush1.bf16.msra.mxu0 0
    %262 = vmatprep.subr.bf16.mxu0 0
    %263 = vmatpush1.bf16.msra.mxu0 0
    %264 = vmatprep.subr.bf16.mxu0 0
    %265 = vmatpush1.bf16.msra.mxu0 0
    %266 = vmatprep.subr.bf16.mxu0 0
    %267 = vmatpush1.bf16.msra.mxu0 0
    %268 = vmatprep.subr.bf16.mxu0 0
    %269 = vmatpush1.bf16.msra.mxu0 0
    %270 = vmatprep.subr.bf16.mxu0 0
    %271 = vmatpush1.bf16.msra.mxu0 0
    %272 = vmatprep.mubr.bf16.mxu0 0
    %273 = vmatmul.mubr.bf16.gmra.mrb[0].mxu0 %v168
    %v274 = vpop.f32.mrb[0].mxu0
    %v275 = vadd.f32 %v190, %v274
    %v276 = vpop.f32.mrb[0].mxu0
    %v277 = vpop.f32.mrb[0].mxu0
    %v278 = vpop.f32.mrb[0].mxu0
    %279 = vdwg.mxu0
    %vm280 = vcmp.gt.f32.partialorder %v275, 0.0
    %v281 = vmul.f32 %v275, 0.01
    %v282 = vsel %vm280, %v275, %v281
    %vm283 = vcmask 58368
    %v284 = vsel %vm283, %v282, -inf
    %285 = vmax.xlane.f32.xlu0 %v284
    %v286 = vpop.xlane.xlu0 %285
    %v287 = vsub.f32 %v282, %v286
    %v288 = vmul.f32 %v287, 1.442695
    %v289 = vpow.pop %v288
    %v290 = vsel %vm283, %v289, 0.0
    %291 = vadd.xlane.f32.xlu0 %v290
    %v292 = vpop.xlane.xlu0 %291
    %v293 = vlog2.pop %v292
    %v294 = vmul.f32 %v293, 0.6931472
    %v295 = vsub.f32 %v287, %v294
    %296 = vst.msk [vmem:[#allocation2] sm:$0x3] %vm283, %v295
    // Predicated region
    $region30: #{tpu_custom_call.1} parent=1 // pred_check
      _
    $region31: #{tpu_custom_call.1} parent=1 // pred_check_branch
      %298 = sbr.rel (0) target = $region33
    $region32: #{tpu_custom_call.1} parent=1 // pred_region
      %s300 = ssub.s32 32, 32
      %301 = vsyncadd [#allocation3], %s300
      %s303 = sshll.u32 [#allocation2], 4
      %s304 = int_to_ptr.vmem [resolvable:$true] %s303
      %306 = dma.vmem_to_hbm [thread:$0]  %s304, 32, %s7, [#allocation3]
    $region33: #{tpu_custom_call.1} parent=1 // pred_fallthru
      _
    // Predicated region
    $region34: #{tpu_custom_call.1} parent=1 // pred_check
      _
    $region35: #{tpu_custom_call.1} parent=1 // pred_check_branch
      %308 = sbr.rel (0) target = $region37
    $region36: #{tpu_custom_call.1} parent=1 // pred_region
      %309 = dma.done [#allocation3], 32
    $region37: #{tpu_custom_call.1} parent=1 // pred_fallthru
      _
    %310 = vsyncpa [#allocation3], 1

</llo_original>
